<compile_context>
chip_gen: v5e
topology: v5e:2x2
jax: 0.10.0
libtpu: 0.0.40
codegen_flags: <defaults>
</compile_context>

<pallas_src>
import numpy as np
import jax
import jax.numpy as jnp
from jax.experimental import pallas as pl
from jax.experimental.pallas import tpu as pltpu


def _fism_kernel(p_ref, bias_ref, q_ref, out_ref):
    # p_ref:    (1, F)       pre-reduced, pre-scaled history vector (resident)
    # bias_ref: (L, 1)       gathered item_bias rows (resident)
    # q_ref:    (tile_n, F)  streamed Q tile in native (N, F) layout
    # out_ref:  (L, tile_n)
    scores = jax.lax.dot_general(
        p_ref[...], q_ref[...],
        dimension_numbers=(((1,), (1,)), ((), ())),   # (1,F) x (tn,F) -> (1,tn)
        preferred_element_type=jnp.float32,
    )
    out_ref[...] = scores + bias_ref[...]             # broadcast -> (L, tile_n)


def _pick_tile_n(N, requested):
    """Tile width over the item axis.

    - Small catalogs (N <= 2048): single full-width block; per-step pipeline
      overhead (~600 cycles) dominates otherwise and a full block is always
      legal regardless of 128-divisibility.
    - Large catalogs: largest multiple-of-128 divisor of N that is <= requested,
      preferring tiles >= 1024 lanes (measured mem-bound kernels hit 85%+ of
      HBM roofline at 512-1024+ vs ~29% at 128).
    """
    if N <= 2048:
        return N
    cands = [t for t in range(128, N + 1, 128) if N % t == 0]
    if not cands:
        return N                                   # no lane-dense divisor: one block
    big = [t for t in cands if 1024 <= t <= requested]
    if big:
        return max(big)
    fits = [t for t in cands if t <= requested]
    return max(fits) if fits else min(cands)


def fism_forward(P_w, Q_w, bias_w, item_ids, alpha, *, tile_n=4096):
    """JAX wrapper reproducing FISM_implicit_model.forward(user_rating, item_ids)."""
    N, F = Q_w.shape
    L = int(item_ids.shape[0])
    tn = _pick_tile_n(N, tile_n)
    grid = (N // tn,)

    # Glue that fuses with the gathers in XLA: gather P rows, reduce over the
    # history axis, fold in the scalar scale.  (inf when L == 1, as in PyTorch.)
    scale = np.power(float(L - 1), -float(alpha))
    p_scaled = (jnp.take(P_w, item_ids, axis=0).sum(axis=0, keepdims=True)
                * jnp.float32(scale))                          # (1, F)
    b_sel = jnp.take(bias_w, item_ids, axis=0)                 # (L, 1)

    return pl.pallas_call(
        _fism_kernel,
        out_shape=jax.ShapeDtypeStruct((L, N), jnp.float32),
        grid_spec=pltpu.PrefetchScalarGridSpec(
            num_scalar_prefetch=0,
            grid=grid,
            in_specs=[
                pl.BlockSpec((1, F), lambda j: (0, 0)),        # p_scaled, resident
                pl.BlockSpec((L, 1), lambda j: (0, 0)),        # bias_sel, resident
                pl.BlockSpec((tn, F), lambda j: (j, 0)),       # Q tile (native layout)
            ],
            out_specs=pl.BlockSpec((L, tn), lambda j: (0, j)), # out tile
        ),
        compiler_params=pltpu.CompilerParams(
            dimension_semantics=("parallel",),
        ),
    )(p_scaled, b_sel, Q_w)


if __name__ == "__main__":
    # Module hyperparameters (small, consistent with the forward pass).
    num_items = 256
    n_features = 32
    alpha = 0.5
    L = 8  # number of rated items in the user's history (len(item_ids))

    key = jax.random.PRNGKey(0)
    kP, kQ, kB, kI = jax.random.split(key, 4)

    # Deterministic parameter init (normal, std=0.01), matching __init__.
    P_w = 0.01 * jax.random.normal(kP, (num_items, n_features), dtype=jnp.float32)
    Q_w = 0.01 * jax.random.normal(kQ, (num_items, n_features), dtype=jnp.float32)
    bias_w = 0.01 * jax.random.normal(kB, (num_items, 1), dtype=jnp.float32)

    item_ids = jax.random.randint(kI, (L,), 0, num_items, dtype=jnp.int32)

    out = fism_forward(P_w, Q_w, bias_w, item_ids, alpha)
    out = jax.block_until_ready(out)

    # Pure-JAX reference check (same math as the PyTorch forward).
    p_sum = jnp.take(P_w, item_ids, axis=0).sum(axis=0)
    ref = (p_sum @ Q_w.T) * np.power(float(L - 1), -alpha)
    ref = ref + jnp.take(bias_w, item_ids, axis=0)             # (L, num_items)
    np.testing.assert_allclose(np.asarray(out), np.asarray(ref), rtol=1e-5, atol=1e-6)

    print("KERNEL_OK")
</pallas_src>

<mosaic_0001>
module attributes {stable_mosaic.version = 11 : i64} {
  func.func @_fism_kernel(%arg0: i32, %arg1: memref<1x32xf32, #tpu.memory_space<vmem>>, %arg2: memref<8x1xf32, #tpu.memory_space<vmem>>, %arg3: memref<256x32xf32, #tpu.memory_space<vmem>>, %arg4: memref<8x256xf32, #tpu.memory_space<vmem>>) attributes {dimension_semantics = [#tpu.dimension_semantics<parallel>], iteration_bounds = array<i64: 1>, scalar_prefetch = 0 : i64, scratch_operands = 0 : i64, tpu.core_type = #tpu.core_type<tc>, window_params = [{pipeline_mode = #tpu.pipeline_mode<synchronous>, transform_indices = @transform_0, window_bounds = array<i64: 1, 32>}, {pipeline_mode = #tpu.pipeline_mode<synchronous>, transform_indices = @transform_1, window_bounds = array<i64: 8, 1>}, {transform_indices = @transform_2, window_bounds = array<i64: 256, 32>}, {transform_indices = @transform_3, window_bounds = array<i64: 8, 256>}]} {
    %c0 = arith.constant 0 : index
    %c0_0 = arith.constant 0 : index
    %0 = vector.load %arg1[%c0, %c0_0] : memref<1x32xf32, #tpu.memory_space<vmem>>, vector<1x32xf32>
    %c0_1 = arith.constant 0 : index
    %c0_2 = arith.constant 0 : index
    %1 = vector.load %arg3[%c0_1, %c0_2] : memref<256x32xf32, #tpu.memory_space<vmem>>, vector<256x32xf32>
    %cst = arith.constant dense<0.000000e+00> : vector<1x256xf32>
    %2 = tpu.matmul %0, %1, %cst {dimension_numbers = #tpu.dot_dimension_numbers<[1], [1], [0], [0], [0, 0, 1, 0], [], []>} : vector<1x32xf32>, vector<256x32xf32>, vector<1x256xf32> -> vector<1x256xf32>
    %c0_3 = arith.constant 0 : index
    %c0_4 = arith.constant 0 : index
    %3 = vector.load %arg2[%c0_3, %c0_4] : memref<8x1xf32, #tpu.memory_space<vmem>>, vector<8x1xf32>
    %4 = vector.broadcast %2 : vector<1x256xf32> to vector<8x256xf32>
    %5 = vector.broadcast %3 : vector<8x1xf32> to vector<8x256xf32>
    %6 = arith.addf %4, %5 : vector<8x256xf32>
    %c0_5 = arith.constant 0 : index
    %c0_6 = arith.constant 0 : index
    %7 = vector.load %arg4[%c0_5, %c0_6] : memref<8x256xf32, #tpu.memory_space<vmem>>, vector<8x256xf32>
    tpu.vector_store %arg4[%c0_5, %c0_6], %6 {strides = array<i32>} : memref<8x256xf32, #tpu.memory_space<vmem>>, vector<8x256xf32>,
    return
  }
  func.func @transform_0(%arg0: i32) -> (i32, i32) {
    %c0_i32 = arith.constant 0 : i32
    %c0_i32_0 = arith.constant 0 : i32
    %c0_i32_1 = arith.constant 0 : i32
    return %c0_i32, %c0_i32_0 : i32, i32
  }
  func.func @transform_1(%arg0: i32) -> (i32, i32) {
    %c0_i32 = arith.constant 0 : i32
    %c0_i32_0 = arith.constant 0 : i32
    %c0_i32_1 = arith.constant 0 : i32
    return %c0_i32, %c0_i32_0 : i32, i32
  }
  func.func @transform_2(%arg0: i32) -> (i32, i32) {
    %c0_i32 = arith.constant 0 : i32
    %c0_i32_0 = arith.constant 0 : i32
    return %arg0, %c0_i32 : i32, i32
  }
  func.func @transform_3(%arg0: i32) -> (i32, i32) {
    %c0_i32 = arith.constant 0 : i32
    %c0_i32_0 = arith.constant 0 : i32
    return %c0_i32, %arg0 : i32, i32
  }
}

</mosaic_0001>

<llo_original>
// kernel: tpu_custom_call.1
$region0: #{tpu_custom_call.1}
  #allocation0 [shape = 'u32[]', space=smem, size = 0x4, offset = 0x4, fixed_abs, tag = 'smem constant byte address 0x4 - core index']
  #allocation1 [shape = 'u32[72,128]{1,0:T(1,128)}', space=vmem, size = 0x9000, scoped, tag = 'internal scratch']
  %s0 = inlined_call_operand.vmem [shape: f32[1,32], index: 0, kind: input, shape index: {}]
  %s1 = inlined_call_operand.vmem [shape: f32[8,1], index: 1, kind: input, shape index: {}]
  %s2 = inlined_call_operand.vmem [shape: f32[256,32], index: 2, kind: input, shape index: {}]
  %s3 = inlined_call_operand.hbm [shape: f32[8,256], index: 3, kind: output, shape index: {}]
  %s4 = sld [smem:[#allocation0]]
  $region22: #{tpu_custom_call.1} parent=0
    _
  %s6 = ssub.s32 1, %s4
  %s7 = scalar_select 0, %s6, %s4
  $region1: #{tpu_custom_call.1} parent=0
    #allocation2 [shape = 'u8[8192]{0}', space=vmem, size = 0x2000, scoped, tag = 'output window, operand 0, single buffered']
    #allocation3 [shape = 's32[1]{0}', space=sflag, size = 0x4, scoped, tag = 'scoped memory for tpu_custom_call.1']
    %8 = vsyncpa [#allocation3], 0
    // Predicated region
    $region2: #{tpu_custom_call.1} parent=1 // pred_check
      _
    $region3: #{tpu_custom_call.1} parent=1 // pred_check_branch
      %10 = sbr.rel (0) target = $region5
    $region4: #{tpu_custom_call.1} parent=1 // pred_region
      _
    $region5: #{tpu_custom_call.1} parent=1 // pred_fallthru
      _
    // Predicated region
    $region6: #{tpu_custom_call.1} parent=1 // pred_check
      _
    $region7: #{tpu_custom_call.1} parent=1 // pred_check_branch
      %12 = sbr.rel (0) target = $region9
    $region8: #{tpu_custom_call.1} parent=1 // pred_region
      _
    $region9: #{tpu_custom_call.1} parent=1 // pred_fallthru
      _
    // Predicated region
    $region10: #{tpu_custom_call.1} parent=1 // pred_check
      _
    $region11: #{tpu_custom_call.1} parent=1 // pred_check_branch
      %14 = sbr.rel (0) target = $region13
    $region12: #{tpu_custom_call.1} parent=1 // pred_region
      _
    $region13: #{tpu_custom_call.1} parent=1 // pred_fallthru
      _
    %v15 = vld [vmem:[%s0] sm:$0x1]
    %v16 = vld [vmem:[%s2] sm:$0xff]
    %v17 = vld [vmem:[%s2 + $0x8] sm:$0xff]
    %v18 = vld [vmem:[%s2 + $0x10] sm:$0xff]
    %v19 = vld [vmem:[%s2 + $0x18] sm:$0xff]
    %v20 = vld [vmem:[%s2 + $0x20] sm:$0xff]
    %v21 = vld [vmem:[%s2 + $0x28] sm:$0xff]
    %v22 = vld [vmem:[%s2 + $0x30] sm:$0xff]
    %v23 = vld [vmem:[%s2 + $0x38] sm:$0xff]
    %v24 = vld [vmem:[%s2 + $0x40] sm:$0xff]
    %v25 = vld [vmem:[%s2 + $0x48] sm:$0xff]
    %v26 = vld [vmem:[%s2 + $0x50] sm:$0xff]
    %v27 = vld [vmem:[%s2 + $0x58] sm:$0xff]
    %v28 = vld [vmem:[%s2 + $0x60] sm:$0xff]
    %v29 = vld [vmem:[%s2 + $0x68] sm:$0xff]
    %v30 = vld [vmem:[%s2 + $0x70] sm:$0xff]
    %v31 = vld [vmem:[%s2 + $0x78] sm:$0xff]
    %v32 = vld [vmem:[%s2 + $0x80] sm:$0xff]
    %v33 = vld [vmem:[%s2 + $0x88] sm:$0xff]
    %v34 = vld [vmem:[%s2 + $0x90] sm:$0xff]
    %v35 = vld [vmem:[%s2 + $0x98] sm:$0xff]
    %v36 = vld [vmem:[%s2 + $0xa0] sm:$0xff]
    %v37 = vld [vmem:[%s2 + $0xa8] sm:$0xff]
    %v38 = vld [vmem:[%s2 + $0xb0] sm:$0xff]
    %v39 = vld [vmem:[%s2 + $0xb8] sm:$0xff]
    %v40 = vld [vmem:[%s2 + $0xc0] sm:$0xff]
    %v41 = vld [vmem:[%s2 + $0xc8] sm:$0xff]
    %v42 = vld [vmem:[%s2 + $0xd0] sm:$0xff]
    %v43 = vld [vmem:[%s2 + $0xd8] sm:$0xff]
    %v44 = vld [vmem:[%s2 + $0xe0] sm:$0xff]
    %v45 = vld [vmem:[%s2 + $0xe8] sm:$0xff]
    %v46 = vld [vmem:[%s2 + $0xf0] sm:$0xff]
    %v47 = vld [vmem:[%s2 + $0xf8] sm:$0xff]
    %vm48 = vcmask 261120
    %v50 = vsel %vm48, %v15, 0
    %v53 = vsel %vm48, %v16, 0
    %v56 = vsel %vm48, %v17, 0
    %v59 = vsel %vm48, %v18, 0
    %v62 = vsel %vm48, %v19, 0
    %v65 = vsel %vm48, %v20, 0
    %v68 = vsel %vm48, %v21, 0
    %v71 = vsel %vm48, %v22, 0
    %v74 = vsel %vm48, %v23, 0
    %v77 = vsel %vm48, %v24, 0
    %v80 = vsel %vm48, %v25, 0
    %v83 = vsel %vm48, %v26, 0
    %v86 = vsel %vm48, %v27, 0
    %v89 = vsel %vm48, %v28, 0
    %v92 = vsel %vm48, %v29, 0
    %v95 = vsel %vm48, %v30, 0
    %v98 = vsel %vm48, %v31, 0
    %v101 = vsel %vm48, %v32, 0
    %v104 = vsel %vm48, %v33, 0
    %v107 = vsel %vm48, %v34, 0
    %v110 = vsel %vm48, %v35, 0
    %v113 = vsel %vm48, %v36, 0
    %v116 = vsel %vm48, %v37, 0
    %v119 = vsel %vm48, %v38, 0
    %v122 = vsel %vm48, %v39, 0
    %v125 = vsel %vm48, %v40, 0
    %v128 = vsel %vm48, %v41, 0
    %v131 = vsel %vm48, %v42, 0
    %v134 = vsel %vm48, %v43, 0
    %v137 = vsel %vm48, %v44, 0
    %v140 = vsel %vm48, %v45, 0
    %v143 = vsel %vm48, %v46, 0
    %v146 = vsel %vm48, %v47, 0
    %148 = vmatpush.xpose.msra.mxu0 %v98
    %149 = vmatpush.xpose.msra.mxu0 %v95
    %150 = vmatpush.xpose.msra.mxu0 %v92
    %151 = vmatpush.xpose.msra.mxu0 %v89
    %152 = vmatpush.xpose.msra.mxu0 %v86
    %153 = vmatpush.xpose.msra.mxu0 %v83
    %154 = vmatpush.xpose.msra.mxu0 %v80
    %155 = vmatpush.xpose.msra.mxu0 %v77
    %156 = vmatpush.xpose.msra.mxu0 %v74
    %157 = vmatpush.xpose.msra.mxu0 %v71
    %158 = vmatpush.xpose.msra.mxu0 %v68
    %159 = vmatpush.xpose.msra.mxu0 %v65
    %160 = vmatpush.xpose.msra.mxu0 %v62
    %161 = vmatpush.xpose.msra.mxu0 %v59
    %162 = vmatpush.xpose.msra.mxu0 %v56
    %163 = vmatpush.xpose.msra.mxu0 %v53
    %164 = vmatmul.f32.gmra.mxu0 %v50
    %v165 = vpop.f32.mrf.mxu0
    %v166 = vadd.f32 0.0, %v165
    %167 = vdwg.mxu0
    %168 = vmatpush.xpose.msra.mxu0 %v146
    %169 = vmatpush.xpose.msra.mxu0 %v143
    %170 = vmatpush.xpose.msra.mxu0 %v140
    %171 = vmatpush.xpose.msra.mxu0 %v137
    %172 = vmatpush.xpose.msra.mxu0 %v134
    %173 = vmatpush.xpose.msra.mxu0 %v131
    %174 = vmatpush.xpose.msra.mxu0 %v128
    %175 = vmatpush.xpose.msra.mxu0 %v125
    %176 = vmatpush.xpose.msra.mxu0 %v122
    %177 = vmatpush.xpose.msra.mxu0 %v119
    %178 = vmatpush.xpose.msra.mxu0 %v116
    %179 = vmatpush.xpose.msra.mxu0 %v113
    %180 = vmatpush.xpose.msra.mxu0 %v110
    %181 = vmatpush.xpose.msra.mxu0 %v107
    %182 = vmatpush.xpose.msra.mxu0 %v104
    %183 = vmatpush.xpose.msra.mxu0 %v101
    %184 = vmatmul.f32.gmra.mxu0 %v50
    %v185 = vpop.f32.mrf.mxu0
    %v186 = vadd.f32 0.0, %v185
    %187 = vdwg.mxu0
    %v188 = vld [vmem:[%s1] sm:$0xff]
    %v189 = vperm.slane %v166, 0
    %v190 = vperm.slane %v186, 0
    %192 = vset.pattern.permute.xlu0 0
    %193 = vperm.xlu0 %192, %v188
    %v194 = vpop.permute.xlu0 %193
    %v196 = vadd.f32 %v189, %v194
    %v197 = vadd.f32 %v190, %v194
    %198 = vst [vmem:[#allocation2] sm:$0xff] %v196
    %199 = vst [vmem:[#allocation2 + $0x8] sm:$0xff] %v197
    // Predicated region
    $region14: #{tpu_custom_call.1} parent=1 // pred_check
      _
    $region15: #{tpu_custom_call.1} parent=1 // pred_check_branch
      %201 = sbr.rel (0) target = $region17
    $region16: #{tpu_custom_call.1} parent=1 // pred_region
      %203 = vsyncadd [#allocation3], 0
      %s205 = sshll.u32 [#allocation2], 4
      %s206 = int_to_ptr.vmem [resolvable:$true] %s205
      %s207 = sshll.u32 %s3, 4
      %s208 = int_to_ptr.hbm [resolvable:$true] %s207
      %210 = dma.vmem_to_hbm [thread:$0]  %s206, 256, %s208, [#allocation3]
    $region17: #{tpu_custom_call.1} parent=1 // pred_fallthru
      _
    // Predicated region
    $region18: #{tpu_custom_call.1} parent=1 // pred_check
      _
    $region19: #{tpu_custom_call.1} parent=1 // pred_check_branch
      %212 = sbr.rel (0) target = $region21
    $region20: #{tpu_custom_call.1} parent=1 // pred_region
      %214 = dma.done [#allocation3], 256
    $region21: #{tpu_custom_call.1} parent=1 // pred_fallthru
      _
    %215 = vsyncpa [#allocation3], 1

</llo_original>
